<compile_context>
chip_gen: v6e
topology: v6e:2x2x1
jax: 0.10.0
libtpu: 0.0.40
codegen_flags: <defaults>
</compile_context>

<pallas_src>
import jax
import jax.numpy as jnp
from jax.experimental import pallas as pl
from jax.experimental.pallas import tpu as pltpu


def _round_up(x: int, m: int) -> int:
    return ((x + m - 1) // m) * m


# ---------------------------------------------------------------------------
# Path 1: small vocab -- one-hot @ table on the MXU.
# ---------------------------------------------------------------------------
def _emb_onehot_kernel_nt(ids_ref, iota_ref, tab_ref, out_ref):
    # ids_ref : (TM, 1)      int32  token ids for this tile
    # iota_ref: (TM, V_pad)  int32  precomputed vocab iota (resident block)
    # tab_ref : (V_pad, n_d)        zero-row-padded table (resident block)
    # out_ref : (TM, n_d)           lane-dense output tile (n_d % 128 == 0)
    onehot = (iota_ref[...] == ids_ref[...]).astype(tab_ref.dtype)
    out_ref[...] = jnp.dot(
        onehot, tab_ref[...], preferred_element_type=jnp.float32
    ).astype(out_ref.dtype)


def _emb_onehot_kernel_t(ids_ref, iota_ref, tabT_ref, out_ref):
    # Transposed variant for n_d not a multiple of 128:
    # ids_ref : (1, 1, TM)   int32  (lane-dense ids)
    # iota_ref: (V_pad, TM)  int32  precomputed vocab iota (resident block)
    # tabT_ref: (n_d, V_pad)        transposed table (resident block)
    # out_ref : (n_d, TM)           last dim multiple of 128 -> unmasked stores
    onehot_t = (iota_ref[...] == ids_ref[0]).astype(tabT_ref.dtype)
    out_ref[...] = jnp.dot(
        tabT_ref[...], onehot_t, preferred_element_type=jnp.float32
    ).astype(out_ref.dtype)


def _embedding_onehot(ids_flat, table, tile_tokens):
    n_V, n_d = table.shape
    (T,) = ids_flat.shape
    itemsize = table.dtype.itemsize

    # Token tile: >=128, multiple of 128 (MXU fill + lane-dense stores).
    TM = min(_round_up(tile_tokens, 128), _round_up(T, 128))
    T_pad = _round_up(T, TM)
    G = T_pad // TM
    V_pad = _round_up(n_V, 128)          # fill the MXU contraction depth

    table_bytes = V_pad * n_d * itemsize
    iota_bytes = V_pad * TM * 4
    out_tile_bytes = TM * n_d * itemsize
    # Everything is default double-buffered; constant-index-map blocks are
    # only DMA'd once but still reserve 2x.  Cap at 48 MiB: safe headroom
    # below v7x's 64 MiB per-TC physical VMEM (v5e/v6e have 128 MiB).
    need = (2 * table_bytes + 2 * iota_bytes + 2 * TM * 4
            + 2 * out_tile_bytes + V_pad * TM * 4 + (4 << 20))
    vmem_limit = int(min(max(need, 32 << 20), 48 << 20))

    cost = pl.CostEstimate(
        flops=int(2 * T_pad * V_pad * n_d),
        transcendentals=0,
        bytes_accessed=int(T_pad * 4 + V_pad * n_d * itemsize
                           + T_pad * n_d * itemsize),
    )
    cparams = pltpu.CompilerParams(
        dimension_semantics=("parallel",),
        vmem_limit_bytes=vmem_limit,
    )

    # Zero-padded vocab rows can never be selected by the one-hot.
    tab_p = jnp.pad(table, ((0, V_pad - n_V), (0, 0)))

    if n_d % 128 == 0:
        # Untransposed: (TM, V_pad) @ (V_pad, n_d) -> (TM, n_d).  Output is
        # already lane-dense; no wrapper-side transpose pass over the result.
        ids_p = jnp.pad(ids_flat, (0, T_pad - T)).reshape(T_pad, 1)
        iota = jax.lax.broadcasted_iota(jnp.int32, (TM, V_pad), 1)
        out = pl.pallas_call(
            _emb_onehot_kernel_nt,
            out_shape=jax.ShapeDtypeStruct((T_pad, n_d), table.dtype),
            grid_spec=pltpu.PrefetchScalarGridSpec(
                num_scalar_prefetch=0,
                grid=(G,),
                in_specs=[
                    pl.BlockSpec((TM, 1), lambda i: (i, 0)),
                    pl.BlockSpec((TM, V_pad), lambda i: (0, 0)),
                    pl.BlockSpec((V_pad, n_d), lambda i: (0, 0)),
                ],
                out_specs=pl.BlockSpec((TM, n_d), lambda i: (i, 0)),
            ),
            compiler_params=cparams,
            cost_estimate=cost,
        )(ids_p, iota, tab_p)
        return out[:T]                                         # (T, n_d)

    # n_d not a multiple of 128: transposed layout so stores stay lane-dense.
    ids_p = jnp.pad(ids_flat, (0, T_pad - T)).reshape(G, 1, TM)
    iota_t = jax.lax.broadcasted_iota(jnp.int32, (V_pad, TM), 0)
    out_t = pl.pallas_call(
        _emb_onehot_kernel_t,
        out_shape=jax.ShapeDtypeStruct((n_d, T_pad), table.dtype),
        grid_spec=pltpu.PrefetchScalarGridSpec(
            num_scalar_prefetch=0,
            grid=(G,),
            in_specs=[
                pl.BlockSpec((1, 1, TM), lambda i: (i, 0, 0)),
                pl.BlockSpec((V_pad, TM), lambda i: (0, 0)),
                pl.BlockSpec((n_d, V_pad), lambda i: (0, 0)),
            ],
            out_specs=pl.BlockSpec((n_d, TM), lambda i: (0, i)),
        ),
        compiler_params=cparams,
        cost_estimate=cost,
    )(ids_p, iota_t, tab_p.T)
    return out_t[:, :T].T                                      # (T, n_d)


# ---------------------------------------------------------------------------
# Path 2: large vocab -- batched manual-DMA row gather (memory-bound).
# ---------------------------------------------------------------------------
def _emb_gather_kernel(ids_sref, tab_hbm, out_ref, buf, sem):
    # ids_sref: (T_pad,) int32 in SMEM (scalar-prefetched token ids)
    # tab_hbm : (n_V, n_d) raw HBM ref (memory_space=pl.ANY)
    # out_ref : (K, n_d) VMEM output block for this grid step
    # buf     : (K, n_d) VMEM scratch
    # sem     : (K,) DMA semaphores -> K row fetches in flight at once
    g = pl.program_id(0)
    K = buf.shape[0]
    copies = []
    for k in range(K):                           # static unroll
        row = ids_sref[g * K + k]
        cp = pltpu.make_async_copy(tab_hbm.at[row], buf.at[k], sem.at[k])
        cp.start()
        copies.append(cp)
    for cp in copies:                            # all K issued before any wait
        cp.wait()
    out_ref[...] = buf[...]


def _embedding_gather(ids_flat, table, rows_per_step):
    n_V, n_d = table.shape
    (T,) = ids_flat.shape
    itemsize = table.dtype.itemsize

    K = max(8, _round_up(min(rows_per_step, max(T, 1)), 8))
    T_pad = _round_up(T, K)
    G = T_pad // K
    # Padding ids are 0 (always a valid row); padded rows are sliced off below.
    ids_p = jnp.pad(ids_flat, (0, T_pad - T))

    cost = pl.CostEstimate(
        flops=0,
        transcendentals=0,
        bytes_accessed=int(T_pad * (2 * n_d * itemsize + 4)),
    )
    out = pl.pallas_call(
        _emb_gather_kernel,
        out_shape=jax.ShapeDtypeStruct((T_pad, n_d), table.dtype),
        grid_spec=pltpu.PrefetchScalarGridSpec(
            num_scalar_prefetch=1,                       # ids -> SMEM
            grid=(G,),
            in_specs=[pl.BlockSpec(memory_space=pl.ANY)],  # table stays in HBM
            out_specs=pl.BlockSpec((K, n_d), lambda g, ids: (g, 0)),
            scratch_shapes=[
                pltpu.VMEM((K, n_d), table.dtype),
                pltpu.SemaphoreType.DMA((K,)),
            ],
        ),
        compiler_params=pltpu.CompilerParams(
            dimension_semantics=("parallel",),           # shard tokens on v7x
            vmem_limit_bytes=int(32 << 20),
        ),
        cost_estimate=cost,
    )(ids_p, table)
    return out[:T]                                       # (T, n_d)


# ---------------------------------------------------------------------------
# Public forward (== EmbeddingLayer.forward / nn.Embedding lookup).
# ---------------------------------------------------------------------------
def embedding_forward(ids, emb_table, *, tile_tokens=512,
                      gather_rows_per_step=16,
                      max_onehot_vocab=512, max_onehot_table_bytes=4 << 20):
    """ids: (B, S) int -> (B, S, n_d) embeddings.

    For best MXU throughput pass `emb_table` as bf16 (cast at the model
    level); the one-hot lookup is exact row selection with f32 accumulation.
    """
    B, S = ids.shape
    n_V, n_d = emb_table.shape
    # TODO(synk): nn.Embedding raises on out-of-range ids; here they are
    # clipped to [0, n_V-1] so the TPU-side row DMA stays in bounds.
    ids_flat = jnp.clip(ids.reshape(-1).astype(jnp.int32), 0, n_V - 1)
    table_bytes = n_V * n_d * emb_table.dtype.itemsize

    # Crossover tuned low: a batched gather costs only n_d*itemsize HBM bytes
    # per token, while the one-hot path costs O(V) VPU work per token.
    use_onehot = (n_V <= max_onehot_vocab
                  and table_bytes <= max_onehot_table_bytes)
    if use_onehot:
        out_flat = _embedding_onehot(ids_flat, emb_table, tile_tokens)
    else:
        out_flat = _embedding_gather(ids_flat, emb_table, gather_rows_per_step)
    return out_flat.reshape(B, S, n_d)


def build_vocab(words, oov="<oov>", pad="<pad>"):
    """Mirrors EmbeddingLayer.__init__ vocab construction from `words`."""
    word2id = {}
    for w in words:
        if w not in word2id:
            word2id[w] = len(word2id)
    if oov not in word2id:
        word2id[oov] = len(word2id)
    if pad not in word2id:
        word2id[pad] = len(word2id)
    return word2id


if __name__ == "__main__":
    key = jax.random.PRNGKey(0)
    k1, k2, k3, k4, k5, k6 = jax.random.split(key, 6)

    # --- case 1: module-scale config (small vocab, n_d < 128) --------------
    #     -> transposed one-hot MXU path (lane-dense (n_d, TM) stores)
    n_d = 32
    words = [f"w{i}" for i in range(30)]
    word2id = build_vocab(words)            # + <oov>, <pad> -> n_V = 32
    n_V = len(word2id)
    emb_table = jax.random.uniform(k1, (n_V, n_d), dtype=jnp.float32,
                                   minval=-0.25, maxval=0.25)
    B, S = 2, 8
    ids = jax.random.randint(k2, (B, S), 0, n_V, dtype=jnp.int32)
    out = jax.block_until_ready(embedding_forward(ids, emb_table))
    ref = jnp.take(emb_table, ids, axis=0)
    assert out.shape == (B, S, n_d)
    assert jnp.allclose(out, ref, atol=1e-6), "one-hot (transposed) mismatch"

    # --- case 2: small vocab, n_d multiple of 128 ---------------------------
    #     -> untransposed one-hot path (no wrapper-side output transpose)
    n_V2, n_d2 = 64, 128
    emb_table2 = jax.random.uniform(k3, (n_V2, n_d2), dtype=jnp.float32,
                                    minval=-0.25, maxval=0.25)
    ids2 = jax.random.randint(k4, (B, S), 0, n_V2, dtype=jnp.int32)
    out2 = jax.block_until_ready(embedding_forward(ids2, emb_table2))
    ref2 = jnp.take(emb_table2, ids2, axis=0)
    assert out2.shape == (B, S, n_d2)
    assert jnp.allclose(out2, ref2, atol=1e-6), "one-hot (untransposed) mismatch"

    # --- case 3: larger vocab -> batched manual-DMA gather path -------------
    n_V3, n_d3 = 2048, 128
    emb_table3 = jax.random.uniform(k5, (n_V3, n_d3), dtype=jnp.float32,
                                    minval=-0.25, maxval=0.25)
    B3, S3 = 2, 16
    ids3 = jax.random.randint(k6, (B3, S3), 0, n_V3, dtype=jnp.int32)
    out3 = jax.block_until_ready(embedding_forward(ids3, emb_table3))
    ref3 = jnp.take(emb_table3, ids3, axis=0)
    assert out3.shape == (B3, S3, n_d3)
    assert jnp.allclose(out3, ref3, atol=1e-6), "batched gather mismatch"

    print("KERNEL_OK")
</pallas_src>

<mosaic_0001>
module attributes {stable_mosaic.version = 11 : i64} {
  func.func @_emb_onehot_kernel_t(%arg0: i32, %arg1: memref<1x1x128xi32, #tpu.memory_space<vmem>>, %arg2: memref<128x128xi32, #tpu.memory_space<vmem>>, %arg3: memref<32x128xf32, #tpu.memory_space<vmem>>, %arg4: memref<32x128xf32, #tpu.memory_space<vmem>>) attributes {dimension_semantics = [#tpu.dimension_semantics<parallel>], iteration_bounds = array<i64: 1>, scalar_prefetch = 0 : i64, scratch_operands = 0 : i64, tpu.core_type = #tpu.core_type<tc>, window_params = [{transform_indices = @transform_0, window_bounds = array<i64: 1, 1, 128>}, {pipeline_mode = #tpu.pipeline_mode<synchronous>, transform_indices = @transform_1, window_bounds = array<i64: 128, 128>}, {pipeline_mode = #tpu.pipeline_mode<synchronous>, transform_indices = @transform_2, window_bounds = array<i64: 32, 128>}, {transform_indices = @transform_3, window_bounds = array<i64: 32, 128>}]} {
    %c0 = arith.constant 0 : index
    %c0_0 = arith.constant 0 : index
    %0 = vector.load %arg2[%c0, %c0_0] : memref<128x128xi32, #tpu.memory_space<vmem>>, vector<128x128xi32>
    %c0_1 = arith.constant 0 : index
    %c0_2 = arith.constant 0 : index
    %c0_3 = arith.constant 0 : index
    %1 = vector.load %arg1[%c0_1, %c0_2, %c0_3] : memref<1x1x128xi32, #tpu.memory_space<vmem>>, vector<1x1x128xi32>
    %2 = vector.shape_cast %1 : vector<1x1x128xi32> to vector<1x128xi32>
    %3 = vector.broadcast %2 : vector<1x128xi32> to vector<128x128xi32>
    %4 = arith.cmpi eq, %0, %3 : vector<128x128xi32>
    %5 = arith.extui %4 : vector<128x128xi1> to vector<128x128xi32>
    %6 = arith.sitofp %5 : vector<128x128xi32> to vector<128x128xf32>
    %c0_4 = arith.constant 0 : index
    %c0_5 = arith.constant 0 : index
    %7 = vector.load %arg3[%c0_4, %c0_5] : memref<32x128xf32, #tpu.memory_space<vmem>>, vector<32x128xf32>
    %cst = arith.constant dense<0.000000e+00> : vector<32x128xf32>
    %8 = tpu.matmul %7, %6, %cst {dimension_numbers = #tpu.dot_dimension_numbers<[1], [0], [0], [1], [0, 0, 1, 1], [], []>} : vector<32x128xf32>, vector<128x128xf32>, vector<32x128xf32> -> vector<32x128xf32>
    %c0_6 = arith.constant 0 : index
    %c0_7 = arith.constant 0 : index
    %9 = vector.load %arg4[%c0_6, %c0_7] : memref<32x128xf32, #tpu.memory_space<vmem>>, vector<32x128xf32>
    tpu.vector_store %arg4[%c0_6, %c0_7], %8 {strides = array<i32>} : memref<32x128xf32, #tpu.memory_space<vmem>>, vector<32x128xf32>,
    return
  }
  func.func @transform_0(%arg0: i32) -> (i32, i32, i32) {
    %c0_i32 = arith.constant 0 : i32
    %c0_i32_0 = arith.constant 0 : i32
    %c0_i32_1 = arith.constant 0 : i32
    return %arg0, %c0_i32, %c0_i32_0 : i32, i32, i32
  }
  func.func @transform_1(%arg0: i32) -> (i32, i32) {
    %c0_i32 = arith.constant 0 : i32
    %c0_i32_0 = arith.constant 0 : i32
    %c0_i32_1 = arith.constant 0 : i32
    return %c0_i32, %c0_i32_0 : i32, i32
  }
  func.func @transform_2(%arg0: i32) -> (i32, i32) {
    %c0_i32 = arith.constant 0 : i32
    %c0_i32_0 = arith.constant 0 : i32
    %c0_i32_1 = arith.constant 0 : i32
    return %c0_i32, %c0_i32_0 : i32, i32
  }
  func.func @transform_3(%arg0: i32) -> (i32, i32) {
    %c0_i32 = arith.constant 0 : i32
    %c0_i32_0 = arith.constant 0 : i32
    return %c0_i32, %arg0 : i32, i32
  }
}

</mosaic_0001>

<llo_original>
// kernel: tpu_custom_call.1
$region0: #{tpu_custom_call.1}
  #allocation0 [shape = 'u32[]', space=smem, size = 0x4, offset = 0x4, fixed_abs, tag = 'smem constant byte address 0x4 - core index']
  #allocation1 [shape = 'u32[144,128]{1,0:T(1,128)}', space=vmem, size = 0x12000, scoped, tag = 'internal scratch']
  %s0 = inlined_call_operand.hbm [shape: s32[1,1,128], index: 0, kind: input, shape index: {}]
  %s1 = inlined_call_operand.hbm [shape: s32[128,128], index: 1, kind: input, shape index: {}]
  %s2 = inlined_call_operand.hbm [shape: f32[32,128], index: 2, kind: input, shape index: {}]
  %s3 = inlined_call_operand.hbm [shape: f32[32,128], index: 3, kind: output, shape index: {}]
  %s4 = sld [smem:[#allocation0]]
  $region34: #{tpu_custom_call.1} parent=0
    _
  %s6 = ssub.s32 1, %s4
  %s7 = scalar_select 0, %s6, %s4
  $region1: #{tpu_custom_call.1} parent=0
    #allocation2 [shape = 'u8[512]{0}', space=vmem, size = 0x400, scoped, tag = 'input window, operand 0, single buffered']
    #allocation3 [shape = 's32[1]{0}', space=sflag, size = 0x4, scoped, tag = 'scoped memory for tpu_custom_call.1']
    #allocation4 [shape = 's32[1]{0}', space=sflag, size = 0x4, scoped, tag = 'scoped memory for tpu_custom_call.1']
    #allocation5 [shape = 'u8[65536]{0}', space=vmem, size = 0x10000, scoped, tag = 'input window, operand 1, single buffered']
    #allocation6 [shape = 's32[1]{0}', space=sflag, size = 0x4, scoped, tag = 'scoped memory for tpu_custom_call.1']
    #allocation7 [shape = 'u8[16384]{0}', space=vmem, size = 0x4000, scoped, tag = 'input window, operand 2, single buffered']
    #allocation8 [shape = 'u8[16384]{0}', space=vmem, size = 0x4000, scoped, tag = 'output window, operand 0, single buffered']
    %8 = vsyncpa [#allocation3], 0
    %9 = vsyncpa [#allocation6], 0
    %10 = vsyncpa [#allocation4], 0
    // Predicated region
    $region2: #{tpu_custom_call.1} parent=1 // pred_check
      _
    $region3: #{tpu_custom_call.1} parent=1 // pred_check_branch
      %12 = sbr.rel (0) target = $region5
    $region4: #{tpu_custom_call.1} parent=1 // pred_region
      %s14 = ssub.s32 16, 16
      %15 = vsyncadd [#allocation3], %s14
      %s17 = sshll.u32 [#allocation2], 4
      %s18 = int_to_ptr.vmem [resolvable:$true] %s17
      %20 = dma.hbm_to_vmem [thread:$0]  %s0, 16, %s18, [#allocation3]
    $region5: #{tpu_custom_call.1} parent=1 // pred_fallthru
      _
    // Predicated region
    $region6: #{tpu_custom_call.1} parent=1 // pred_check
      _
    $region7: #{tpu_custom_call.1} parent=1 // pred_check_branch
      %22 = sbr.rel (0) target = $region9
    $region8: #{tpu_custom_call.1} parent=1 // pred_region
      %s24 = ssub.s32 2048, 2048
      %25 = vsyncadd [#allocation6], %s24
      %s26 = sshll.u32 [#allocation5], 4
      %s27 = int_to_ptr.vmem [resolvable:$true] %s26
      %32 = dma.hbm_to_vmem [thread:$0]  %s1, 2048, %s27, [#allocation6], 128, 128, 8
    $region9: #{tpu_custom_call.1} parent=1 // pred_fallthru
      _
    // Predicated region
    $region10: #{tpu_custom_call.1} parent=1 // pred_check
      _
    $region11: #{tpu_custom_call.1} parent=1 // pred_check_branch
      %34 = sbr.rel (0) target = $region13
    $region12: #{tpu_custom_call.1} parent=1 // pred_region
      %s36 = ssub.s32 512, 512
      %37 = vsyncadd [#allocation6], %s36
      %s38 = sshll.u32 [#allocation7], 4
      %s39 = int_to_ptr.vmem [resolvable:$true] %s38
      %44 = dma.hbm_to_vmem [thread:$0]  %s2, 512, %s39, [#allocation6], 128, 128, 8
    $region13: #{tpu_custom_call.1} parent=1 // pred_fallthru
      _
    // Predicated region
    $region14: #{tpu_custom_call.1} parent=1 // pred_check
      _
    $region15: #{tpu_custom_call.1} parent=1 // pred_check_branch
      %46 = sbr.rel (0) target = $region17
    $region16: #{tpu_custom_call.1} parent=1 // pred_region
      %47 = dma.done [#allocation3], 16
    $region17: #{tpu_custom_call.1} parent=1 // pred_fallthru
      _
    // Predicated region
    $region18: #{tpu_custom_call.1} parent=1 // pred_check
      _
    $region19: #{tpu_custom_call.1} parent=1 // pred_check_branch
      %49 = sbr.rel (0) target = $region21
    $region20: #{tpu_custom_call.1} parent=1 // pred_region
      %50 = dma.done [#allocation6], 2048
    $region21: #{tpu_custom_call.1} parent=1 // pred_fallthru
      _
    // Predicated region
    $region22: #{tpu_custom_call.1} parent=1 // pred_check
      _
    $region23: #{tpu_custom_call.1} parent=1 // pred_check_branch
      %52 = sbr.rel (0) target = $region25
    $region24: #{tpu_custom_call.1} parent=1 // pred_region
      %53 = dma.done [#allocation6], 512
    $region25: #{tpu_custom_call.1} parent=1 // pred_fallthru
      _
    %v54 = vld [vmem:[#allocation5] sm:$0xff]
    %v55 = vld [vmem:[#allocation5 + $0x8] sm:$0xff]
    %v56 = vld [vmem:[#allocation5 + $0x10] sm:$0xff]
    %v57 = vld [vmem:[#allocation5 + $0x18] sm:$0xff]
    %v58 = vld [vmem:[#allocation5 + $0x20] sm:$0xff]
    %v59 = vld [vmem:[#allocation5 + $0x28] sm:$0xff]
    %v60 = vld [vmem:[#allocation5 + $0x30] sm:$0xff]
    %v61 = vld [vmem:[#allocation5 + $0x38] sm:$0xff]
    %v62 = vld [vmem:[#allocation5 + $0x40] sm:$0xff]
    %v63 = vld [vmem:[#allocation5 + $0x48] sm:$0xff]
    %v64 = vld [vmem:[#allocation5 + $0x50] sm:$0xff]
    %v65 = vld [vmem:[#allocation5 + $0x58] sm:$0xff]
    %v66 = vld [vmem:[#allocation5 + $0x60] sm:$0xff]
    %v67 = vld [vmem:[#allocation5 + $0x68] sm:$0xff]
    %v68 = vld [vmem:[#allocation5 + $0x70] sm:$0xff]
    %v69 = vld [vmem:[#allocation5 + $0x78] sm:$0xff]
    %v70 = vld [vmem:[#allocation2] sm:$0x1]
    %v71 = vlaneseq
    %v72 = vshrl.u32 %v71, 7
    %v73 = vsub.s32 0, %v72
    %v74 = vrot.slane %v70, %v73
    %vm75 = vcmp.eq.s32.totalorder %v54, %v74
    %vm76 = vcmp.eq.s32.totalorder %v55, %v74
    %vm77 = vcmp.eq.s32.totalorder %v56, %v74
    %vm78 = vcmp.eq.s32.totalorder %v57, %v74
    %vm79 = vcmp.eq.s32.totalorder %v58, %v74
    %vm80 = vcmp.eq.s32.totalorder %v59, %v74
    %vm81 = vcmp.eq.s32.totalorder %v60, %v74
    %vm82 = vcmp.eq.s32.totalorder %v61, %v74
    %vm83 = vcmp.eq.s32.totalorder %v62, %v74
    %vm84 = vcmp.eq.s32.totalorder %v63, %v74
    %vm85 = vcmp.eq.s32.totalorder %v64, %v74
    %vm86 = vcmp.eq.s32.totalorder %v65, %v74
    %vm87 = vcmp.eq.s32.totalorder %v66, %v74
    %vm88 = vcmp.eq.s32.totalorder %v67, %v74
    %vm89 = vcmp.eq.s32.totalorder %v68, %v74
    %vm90 = vcmp.eq.s32.totalorder %v69, %v74
    %v91 = vsel %vm75, 1, 0
    %v92 = vsel %vm76, 1, 0
    %v93 = vsel %vm77, 1, 0
    %v94 = vsel %vm78, 1, 0
    %v95 = vsel %vm79, 1, 0
    %v96 = vsel %vm80, 1, 0
    %v97 = vsel %vm81, 1, 0
    %v98 = vsel %vm82, 1, 0
    %v99 = vsel %vm83, 1, 0
    %v100 = vsel %vm84, 1, 0
    %v101 = vsel %vm85, 1, 0
    %v102 = vsel %vm86, 1, 0
    %v103 = vsel %vm87, 1, 0
    %v104 = vsel %vm88, 1, 0
    %v105 = vsel %vm89, 1, 0
    %v106 = vsel %vm90, 1, 0
    %v107 = vcvt.s32.f32 %v91
    %v108 = vcvt.s32.f32 %v92
    %v109 = vcvt.s32.f32 %v93
    %v110 = vcvt.s32.f32 %v94
    %v111 = vcvt.s32.f32 %v95
    %v112 = vcvt.s32.f32 %v96
    %v113 = vcvt.s32.f32 %v97
    %v114 = vcvt.s32.f32 %v98
    %v115 = vcvt.s32.f32 %v99
    %v116 = vcvt.s32.f32 %v100
    %v117 = vcvt.s32.f32 %v101
    %v118 = vcvt.s32.f32 %v102
    %v119 = vcvt.s32.f32 %v103
    %v120 = vcvt.s32.f32 %v104
    %v121 = vcvt.s32.f32 %v105
    %v122 = vcvt.s32.f32 %v106
    %v123 = vld [vmem:[#allocation7] sm:$0xff]
    %v124 = vld [vmem:[#allocation7 + $0x8] sm:$0xff]
    %v125 = vld [vmem:[#allocation7 + $0x10] sm:$0xff]
    %v126 = vld [vmem:[#allocation7 + $0x18] sm:$0xff]
    %127 = vmatprep.subr.mxu0 0.0
    %128 = vmatpush1.msra.mxu0 %v122
    %129 = vmatprep.subr.mxu0 0.0
    %130 = vmatpush1.msra.mxu0 %v121
    %131 = vmatprep.subr.mxu0 0.0
    %132 = vmatpush1.msra.mxu0 %v120
    %133 = vmatprep.subr.mxu0 0.0
    %134 = vmatpush1.msra.mxu0 %v119
    %135 = vmatprep.subr.mxu0 0.0
    %136 = vmatpush1.msra.mxu0 %v118
    %137 = vmatprep.subr.mxu0 0.0
    %138 = vmatpush1.msra.mxu0 %v117
    %139 = vmatprep.subr.mxu0 0.0
    %140 = vmatpush1.msra.mxu0 %v116
    %141 = vmatprep.subr.mxu0 0.0
    %142 = vmatpush1.msra.mxu0 %v115
    %143 = vmatprep.subr.mxu0 0.0
    %144 = vmatpush1.msra.mxu0 %v114
    %145 = vmatprep.subr.mxu0 0.0
    %146 = vmatpush1.msra.mxu0 %v113
    %147 = vmatprep.subr.mxu0 0.0
    %148 = vmatpush1.msra.mxu0 %v112
    %149 = vmatprep.subr.mxu0 0.0
    %150 = vmatpush1.msra.mxu0 %v111
    %151 = vmatprep.subr.mxu0 0.0
    %152 = vmatpush1.msra.mxu0 %v110
    %153 = vmatprep.subr.mxu0 0.0
    %154 = vmatpush1.msra.mxu0 %v109
    %155 = vmatprep.subr.mxu0 0.0
    %156 = vmatpush1.msra.mxu0 %v108
    %157 = vmatprep.subr.mxu0 0.0
    %158 = vmatpush1.msra.mxu0 %v107
    %159 = vmatprep.subr.mxu0 0.0
    %160 = vmatpush2.msra.mxu0 0.0
    %161 = vmatprep.subr.mxu0 0.0
    %162 = vmatpush2.msra.mxu0 0.0
    %163 = vmatprep.subr.mxu0 0.0
    %164 = vmatpush2.msra.mxu0 0.0
    %165 = vmatprep.subr.mxu0 0.0
    %166 = vmatpush2.msra.mxu0 0.0
    %167 = vmatprep.subr.mxu0 0.0
    %168 = vmatpush2.msra.mxu0 0.0
    %169 = vmatprep.subr.mxu0 0.0
    %170 = vmatpush2.msra.mxu0 0.0
    %171 = vmatprep.subr.mxu0 0.0
    %172 = vmatpush2.msra.mxu0 0.0
    %173 = vmatprep.subr.mxu0 0.0
    %174 = vmatpush2.msra.mxu0 0.0
    %175 = vmatprep.subr.mxu0 0.0
    %176 = vmatpush2.msra.mxu0 0.0
    %177 = vmatprep.subr.mxu0 0.0
    %178 = vmatpush2.msra.mxu0 0.0
    %179 = vmatprep.subr.mxu0 0.0
    %180 = vmatpush2.msra.mxu0 0.0
    %181 = vmatprep.subr.mxu0 0.0
    %182 = vmatpush2.msra.mxu0 0.0
    %183 = vmatprep.subr.mxu0 0.0
    %184 = vmatpush2.msra.mxu0 0.0
    %185 = vmatprep.subr.mxu0 0.0
    %186 = vmatpush2.msra.mxu0 0.0
    %187 = vmatprep.subr.mxu0 0.0
    %188 = vmatpush2.msra.mxu0 0.0
    %189 = vmatprep.subr.mxu0 0.0
    %190 = vmatpush2.msra.mxu0 0.0
    %191 = vmatprep.mubr.f32.mxu0 0.0
    %192 = vmatmul.mubr.f32.gmra.mxu0 %v123
    %v193 = vpop.f32.mrf.mxu0
    %v194 = vadd.f32 0.0, %v193
    %v195 = vpop.f32.mrf.mxu0
    %196 = vmatprep.mubr.f32.mxu0 0.0
    %197 = vmatmul.mubr.f32.gmra.mxu0 %v124
    %v198 = vpop.f32.mrf.mxu0
    %v199 = vadd.f32 0.0, %v198
    %v200 = vpop.f32.mrf.mxu0
    %201 = vmatprep.mubr.f32.mxu0 0.0
    %202 = vmatmul.mubr.f32.gmra.mxu0 %v125
    %v203 = vpop.f32.mrf.mxu0
    %v204 = vadd.f32 0.0, %v203
    %v205 = vpop.f32.mrf.mxu0
    %206 = vmatprep.mubr.f32.mxu0 0.0
    %207 = vmatmul.mubr.f32.gmra.mxu0 %v126
    %v208 = vpop.f32.mrf.mxu0
    %v209 = vadd.f32 0.0, %v208
    %v210 = vpop.f32.mrf.mxu0
    %211 = vdwg.mxu0
    %212 = vst [vmem:[#allocation8] sm:$0xff] %v194
    %213 = vst [vmem:[#allocation8 + $0x8] sm:$0xff] %v199
    %214 = vst [vmem:[#allocation8 + $0x10] sm:$0xff] %v204
    %215 = vst [vmem:[#allocation8 + $0x18] sm:$0xff] %v209
    // Predicated region
    $region26: #{tpu_custom_call.1} parent=1 // pred_check
      _
    $region27: #{tpu_custom_call.1} parent=1 // pred_check_branch
      %217 = sbr.rel (0) target = $region29
    $region28: #{tpu_custom_call.1} parent=1 // pred_region
      %s219 = ssub.s32 512, 512
      %220 = vsyncadd [#allocation4], %s219
      %s221 = sshll.u32 [#allocation8], 4
      %s222 = int_to_ptr.vmem [resolvable:$true] %s221
      %227 = dma.vmem_to_hbm [thread:$0]  %s222, 512, %s3, [#allocation4], 128, 128, 8
    $region29: #{tpu_custom_call.1} parent=1 // pred_fallthru
      _
    // Predicated region
    $region30: #{tpu_custom_call.1} parent=1 // pred_check
      _
    $region31: #{tpu_custom_call.1} parent=1 // pred_check_branch
      %229 = sbr.rel (0) target = $region33
    $region32: #{tpu_custom_call.1} parent=1 // pred_region
      %230 = dma.done [#allocation4], 512
    $region33: #{tpu_custom_call.1} parent=1 // pred_fallthru
      _
    %231 = vsyncpa [#allocation3], 1
    %232 = vsyncpa [#allocation6], 1
    %233 = vsyncpa [#allocation4], 1

</llo_original>
